<compile_context>
chip_gen: v6e
topology: v6e:2x2x1
jax: 0.10.0
libtpu: 0.0.40
codegen_flags: <defaults>
</compile_context>

<pallas_src>
import functools

import jax
import jax.numpy as jnp
from jax import lax
from jax.experimental import pallas as pl
from jax.experimental.pallas import tpu as pltpu


def msd_kernel(x_ref, bits_ref, w_ref, b_ref, o_ref, *, num_samples, keep_thresh, scale):
    x = x_ref[...].astype(jnp.float32)          # (TB, H)
    thr = jnp.int32(keep_thresh)

    # Count, per element, how many of the num_samples dropout masks keep it (VPU only).
    def body(s, cnt):
        return cnt + (bits_ref[s] < thr).astype(jnp.int32)

    cnt = lax.fori_loop(0, num_samples, body,
                        jnp.zeros(x.shape, jnp.int32), unroll=True)

    # Fold inverted-dropout scaling and the 1/num_samples mean into one scalar multiply.
    xm = x * (cnt.astype(jnp.float32) * jnp.float32(scale))   # (TB, H)

    # Single MXU matmul + single bias add.
    out = jnp.dot(xm, w_ref[...].astype(jnp.float32),
                  preferred_element_type=jnp.float32)
    out = out + b_ref[...].astype(jnp.float32)                # (1, C_pad) broadcasts
    o_ref[...] = out.astype(o_ref.dtype)


def multi_sample_dropout(x, w, b, key, *, max_dropout_rate, num_samples, block_b=256):
    """x: (B, H); w: (H, C) classifier weight (pre-transposed); b: (C,) or (1, C);
    key: jax PRNG key.  Returns (B, C) = mean_s classifier(dropout_p(x))."""
    B, H = x.shape
    Hw, C = w.shape
    assert Hw == H
    p = float(max_dropout_rate)
    ns = int(num_samples)

    LANE, SUB = 128, 8
    C_pad = ((C + LANE - 1) // LANE) * LANE            # lane-dense output stores
    TB = min(((B + SUB - 1) // SUB) * SUB, block_b)    # batch tile (sublane multiple)
    B_pad = ((B + TB - 1) // TB) * TB

    # Integer keep-threshold on signed int32 random bits:
    #   P(bits_i32 < thr) == 1 - p   (bits uniform over [-2^31, 2^31)).
    keep_prob = min(max(1.0 - p, 0.0), 1.0)
    thr = int(round(keep_prob * 2.0 ** 32)) - 2 ** 31
    thr = max(-(2 ** 31), min(thr, 2 ** 31 - 1))
    # p >= 1.0: everything is dropped -> output is just the bias (avoid 1/0 -> NaN).
    scale = 0.0 if p >= 1.0 else 1.0 / ((1.0 - p) * ns)

    x_p = jnp.zeros((B_pad, H), x.dtype).at[:B, :].set(x)
    w_p = jnp.zeros((H, C_pad), w.dtype).at[:, :C].set(w)
    b_p = jnp.zeros((1, C_pad), b.dtype).at[:, :C].set(jnp.reshape(b, (1, C)))

    bits_u = jax.random.bits(key, (ns, B_pad, H), dtype=jnp.uint32)
    bits = lax.bitcast_convert_type(bits_u, jnp.int32)

    kernel = functools.partial(msd_kernel, num_samples=ns, keep_thresh=thr, scale=scale)

    out_p = pl.pallas_call(
        kernel,
        out_shape=jax.ShapeDtypeStruct((B_pad, C_pad), jnp.float32),
        grid_spec=pltpu.PrefetchScalarGridSpec(
            num_scalar_prefetch=0,
            grid=(B_pad // TB,),
            in_specs=[
                pl.BlockSpec((TB, H), lambda i: (i, 0)),
                pl.BlockSpec((ns, TB, H), lambda i: (0, i, 0)),
                pl.BlockSpec((H, C_pad), lambda i: (0, 0)),   # resident weight
                pl.BlockSpec((1, C_pad), lambda i: (0, 0)),   # resident bias
            ],
            out_specs=pl.BlockSpec((TB, C_pad), lambda i: (i, 0)),
        ),
        compiler_params=pltpu.CompilerParams(
            dimension_semantics=("parallel",),
        ),
    )(x_p, bits, w_p, b_p)

    return out_p[:B, :C].astype(x.dtype)


if __name__ == "__main__":
    # Small shapes consistent with the forward: x is (batch, hidden), classifier is
    # Linear(hidden -> num_classes) stored transposed as (H, C).
    B, H, C = 8, 32, 16
    max_dropout_rate = 0.3
    num_samples = 4

    key = jax.random.PRNGKey(0)
    kx, kw, kb, kd = jax.random.split(key, 4)

    x = jax.random.normal(kx, (B, H), dtype=jnp.float32)
    w = (jax.random.normal(kw, (H, C), dtype=jnp.float32) / jnp.sqrt(H)).astype(jnp.float32)
    b = (jax.random.normal(kb, (1, C), dtype=jnp.float32) * 0.01).astype(jnp.float32)

    out = multi_sample_dropout(
        x, w, b, kd, max_dropout_rate=max_dropout_rate, num_samples=num_samples
    )
    jax.block_until_ready(out)

    assert out.shape == (B, C) and out.dtype == jnp.float32

    # Pure-JAX reference using the exact same random bits the wrapper draws
    # (B is already a multiple of 8, so the padded bits shape matches exactly).
    bits_u = jax.random.bits(kd, (num_samples, B, H), dtype=jnp.uint32)
    bits = lax.bitcast_convert_type(bits_u, jnp.int32)
    thr = int(round((1.0 - max_dropout_rate) * 2.0 ** 32)) - 2 ** 31
    keep = (bits < thr).astype(jnp.float32)
    dropped = keep * x[None, :, :] / (1.0 - max_dropout_rate)
    ref = jnp.mean(jnp.einsum("sbh,hc->sbc", dropped, w) + b, axis=0)
    assert jnp.allclose(out, ref, rtol=1e-4, atol=1e-4), "mismatch vs reference"

    print("KERNEL_OK")
</pallas_src>

<mosaic_0001>
module attributes {stable_mosaic.version = 11 : i64} {
  func.func @msd_kernel(%arg0: i32, %arg1: memref<8x32xf32, #tpu.memory_space<vmem>>, %arg2: memref<4x8x32xi32, #tpu.memory_space<vmem>>, %arg3: memref<32x128xf32, #tpu.memory_space<vmem>>, %arg4: memref<1x128xf32, #tpu.memory_space<vmem>>, %arg5: memref<8x128xf32, #tpu.memory_space<vmem>>) attributes {dimension_semantics = [#tpu.dimension_semantics<parallel>], iteration_bounds = array<i64: 1>, scalar_prefetch = 0 : i64, scratch_operands = 0 : i64, tpu.core_type = #tpu.core_type<tc>, window_params = [{transform_indices = @transform_0, window_bounds = array<i64: 8, 32>}, {transform_indices = @transform_1, window_bounds = array<i64: 4, 8, 32>}, {pipeline_mode = #tpu.pipeline_mode<synchronous>, transform_indices = @transform_2, window_bounds = array<i64: 32, 128>}, {pipeline_mode = #tpu.pipeline_mode<synchronous>, transform_indices = @transform_3, window_bounds = array<i64: 1, 128>}, {transform_indices = @transform_4, window_bounds = array<i64: 8, 128>}]} {
    %c0 = arith.constant 0 : index
    %c0_0 = arith.constant 0 : index
    %0 = vector.load %arg1[%c0, %c0_0] : memref<8x32xf32, #tpu.memory_space<vmem>>, vector<8x32xf32>
    %c0_i32 = arith.constant 0 : i32
    %1 = vector.broadcast %c0_i32 : i32 to vector<8x32xi32>
    %c858993459_i32 = arith.constant 858993459 : i32
    %c0_i32_1 = arith.constant 0 : i32
    %2 = arith.index_cast %c0_i32_1 : i32 to index
    %c0_2 = arith.constant 0 : index
    %c0_3 = arith.constant 0 : index
    %3 = vector.load %arg2[%2, %c0_2, %c0_3] : memref<4x8x32xi32, #tpu.memory_space<vmem>>, vector<1x8x32xi32>
    %4 = vector.shape_cast %3 : vector<1x8x32xi32> to vector<8x32xi32>
    %5 = vector.broadcast %c858993459_i32 : i32 to vector<8x32xi32>
    %6 = arith.cmpi slt, %4, %5 : vector<8x32xi32>
    %7 = arith.extui %6 : vector<8x32xi1> to vector<8x32xi32>
    %8 = arith.addi %1, %7 : vector<8x32xi32>
    %c1_i32 = arith.constant 1 : i32
    %9 = arith.index_cast %c1_i32 : i32 to index
    %c0_4 = arith.constant 0 : index
    %c0_5 = arith.constant 0 : index
    %10 = vector.load %arg2[%9, %c0_4, %c0_5] : memref<4x8x32xi32, #tpu.memory_space<vmem>>, vector<1x8x32xi32>
    %11 = vector.shape_cast %10 : vector<1x8x32xi32> to vector<8x32xi32>
    %12 = vector.broadcast %c858993459_i32 : i32 to vector<8x32xi32>
    %13 = arith.cmpi slt, %11, %12 : vector<8x32xi32>
    %14 = arith.extui %13 : vector<8x32xi1> to vector<8x32xi32>
    %15 = arith.addi %8, %14 : vector<8x32xi32>
    %c2_i32 = arith.constant 2 : i32
    %16 = arith.index_cast %c2_i32 : i32 to index
    %c0_6 = arith.constant 0 : index
    %c0_7 = arith.constant 0 : index
    %17 = vector.load %arg2[%16, %c0_6, %c0_7] : memref<4x8x32xi32, #tpu.memory_space<vmem>>, vector<1x8x32xi32>
    %18 = vector.shape_cast %17 : vector<1x8x32xi32> to vector<8x32xi32>
    %19 = vector.broadcast %c858993459_i32 : i32 to vector<8x32xi32>
    %20 = arith.cmpi slt, %18, %19 : vector<8x32xi32>
    %21 = arith.extui %20 : vector<8x32xi1> to vector<8x32xi32>
    %22 = arith.addi %15, %21 : vector<8x32xi32>
    %c3_i32 = arith.constant 3 : i32
    %23 = arith.index_cast %c3_i32 : i32 to index
    %c0_8 = arith.constant 0 : index
    %c0_9 = arith.constant 0 : index
    %24 = vector.load %arg2[%23, %c0_8, %c0_9] : memref<4x8x32xi32, #tpu.memory_space<vmem>>, vector<1x8x32xi32>
    %25 = vector.shape_cast %24 : vector<1x8x32xi32> to vector<8x32xi32>
    %26 = vector.broadcast %c858993459_i32 : i32 to vector<8x32xi32>
    %27 = arith.cmpi slt, %25, %26 : vector<8x32xi32>
    %28 = arith.extui %27 : vector<8x32xi1> to vector<8x32xi32>
    %29 = arith.addi %22, %28 : vector<8x32xi32>
    %c4_i32 = arith.constant 4 : i32
    %30 = arith.sitofp %29 : vector<8x32xi32> to vector<8x32xf32>
    %cst = arith.constant 0.357142866 : f32
    %31 = vector.broadcast %cst : f32 to vector<8x32xf32>
    %32 = arith.mulf %30, %31 : vector<8x32xf32>
    %33 = arith.mulf %0, %32 : vector<8x32xf32>
    %c0_10 = arith.constant 0 : index
    %c0_11 = arith.constant 0 : index
    %34 = vector.load %arg3[%c0_10, %c0_11] : memref<32x128xf32, #tpu.memory_space<vmem>>, vector<32x128xf32>
    %cst_12 = arith.constant dense<0.000000e+00> : vector<8x128xf32>
    %35 = tpu.matmul %33, %34, %cst_12 {dimension_numbers = #tpu.dot_dimension_numbers<[1], [0], [0], [1], [0, 0, 1, 1], [], []>} : vector<8x32xf32>, vector<32x128xf32>, vector<8x128xf32> -> vector<8x128xf32>
    %c0_13 = arith.constant 0 : index
    %c0_14 = arith.constant 0 : index
    %36 = vector.load %arg4[%c0_13, %c0_14] : memref<1x128xf32, #tpu.memory_space<vmem>>, vector<1x128xf32>
    %37 = vector.broadcast %36 : vector<1x128xf32> to vector<8x128xf32>
    %38 = arith.addf %35, %37 : vector<8x128xf32>
    %c0_15 = arith.constant 0 : index
    %c0_16 = arith.constant 0 : index
    %39 = vector.load %arg5[%c0_15, %c0_16] : memref<8x128xf32, #tpu.memory_space<vmem>>, vector<8x128xf32>
    tpu.vector_store %arg5[%c0_15, %c0_16], %38 {strides = array<i32>} : memref<8x128xf32, #tpu.memory_space<vmem>>, vector<8x128xf32>,
    return
  }
  func.func @transform_0(%arg0: i32) -> (i32, i32) {
    %c0_i32 = arith.constant 0 : i32
    %c0_i32_0 = arith.constant 0 : i32
    return %arg0, %c0_i32 : i32, i32
  }
  func.func @transform_1(%arg0: i32) -> (i32, i32, i32) {
    %c0_i32 = arith.constant 0 : i32
    %c0_i32_0 = arith.constant 0 : i32
    %c0_i32_1 = arith.constant 0 : i32
    return %c0_i32, %arg0, %c0_i32_0 : i32, i32, i32
  }
  func.func @transform_2(%arg0: i32) -> (i32, i32) {
    %c0_i32 = arith.constant 0 : i32
    %c0_i32_0 = arith.constant 0 : i32
    %c0_i32_1 = arith.constant 0 : i32
    return %c0_i32, %c0_i32_0 : i32, i32
  }
  func.func @transform_3(%arg0: i32) -> (i32, i32) {
    %c0_i32 = arith.constant 0 : i32
    %c0_i32_0 = arith.constant 0 : i32
    %c0_i32_1 = arith.constant 0 : i32
    return %c0_i32, %c0_i32_0 : i32, i32
  }
  func.func @transform_4(%arg0: i32) -> (i32, i32) {
    %c0_i32 = arith.constant 0 : i32
    %c0_i32_0 = arith.constant 0 : i32
    return %arg0, %c0_i32 : i32, i32
  }
}

</mosaic_0001>

<llo_original>
// kernel: tpu_custom_call.1
$region0: #{tpu_custom_call.1}
  #allocation0 [shape = 'u32[]', space=smem, size = 0x4, offset = 0x4, fixed_abs, tag = 'smem constant byte address 0x4 - core index']
  #allocation1 [shape = 'u32[144,128]{1,0:T(1,128)}', space=vmem, size = 0x12000, scoped, tag = 'internal scratch']
  %s0 = inlined_call_operand.hbm [shape: f32[8,32], index: 0, kind: input, shape index: {}]
  %s1 = inlined_call_operand.hbm [shape: s32[4,8,32], index: 1, kind: input, shape index: {}]
  %s2 = inlined_call_operand.hbm [shape: f32[32,128], index: 2, kind: input, shape index: {}]
  %s3 = inlined_call_operand.vmem [shape: f32[1,128], index: 3, kind: input, shape index: {}]
  %s4 = inlined_call_operand.hbm [shape: f32[8,128], index: 4, kind: output, shape index: {}]
  %s5 = sld [smem:[#allocation0]]
  $region38: #{tpu_custom_call.1} parent=0
    _
  %s7 = ssub.s32 1, %s5
  %s8 = scalar_select 0, %s7, %s5
  $region1: #{tpu_custom_call.1} parent=0
    #allocation2 [shape = 'u8[4096]{0}', space=vmem, size = 0x1000, scoped, tag = 'input window, operand 0, single buffered']
    #allocation3 [shape = 's32[1]{0}', space=sflag, size = 0x4, scoped, tag = 'scoped memory for tpu_custom_call.1']
    #allocation4 [shape = 's32[1]{0}', space=sflag, size = 0x4, scoped, tag = 'scoped memory for tpu_custom_call.1']
    #allocation5 [shape = 'u8[16384]{0}', space=vmem, size = 0x4000, scoped, tag = 'input window, operand 1, single buffered']
    #allocation6 [shape = 's32[1]{0}', space=sflag, size = 0x4, scoped, tag = 'scoped memory for tpu_custom_call.1']
    #allocation7 [shape = 'u8[16384]{0}', space=vmem, size = 0x4000, scoped, tag = 'input window, operand 2, single buffered']
    #allocation8 [shape = 'u8[4096]{0}', space=vmem, size = 0x1000, scoped, tag = 'output window, operand 0, single buffered']
    %9 = vsyncpa [#allocation3], 0
    %10 = vsyncpa [#allocation6], 0
    %11 = vsyncpa [#allocation4], 0
    // Predicated region
    $region2: #{tpu_custom_call.1} parent=1 // pred_check
      _
    $region3: #{tpu_custom_call.1} parent=1 // pred_check_branch
      %13 = sbr.rel (0) target = $region5
    $region4: #{tpu_custom_call.1} parent=1 // pred_region
      %s15 = ssub.s32 128, 128
      %16 = vsyncadd [#allocation3], %s15
      %s18 = sshll.u32 [#allocation2], 4
      %s19 = int_to_ptr.vmem [resolvable:$true] %s18
      %21 = dma.hbm_to_vmem [thread:$0]  %s0, 128, %s19, [#allocation3]
    $region5: #{tpu_custom_call.1} parent=1 // pred_fallthru
      _
    // Predicated region
    $region6: #{tpu_custom_call.1} parent=1 // pred_check
      _
    $region7: #{tpu_custom_call.1} parent=1 // pred_check_branch
      %23 = sbr.rel (0) target = $region9
    $region8: #{tpu_custom_call.1} parent=1 // pred_region
      %s25 = ssub.s32 512, 512
      %26 = vsyncadd [#allocation6], %s25
      %s27 = sshll.u32 [#allocation5], 4
      %s28 = int_to_ptr.vmem [resolvable:$true] %s27
      %33 = dma.hbm_to_vmem [thread:$0]  %s1, 512, %s28, [#allocation6], 128, 128, 8
    $region9: #{tpu_custom_call.1} parent=1 // pred_fallthru
      _
    // Predicated region
    $region10: #{tpu_custom_call.1} parent=1 // pred_check
      _
    $region11: #{tpu_custom_call.1} parent=1 // pred_check_branch
      %35 = sbr.rel (0) target = $region13
    $region12: #{tpu_custom_call.1} parent=1 // pred_region
      %s37 = ssub.s32 512, 512
      %38 = vsyncadd [#allocation6], %s37
      %s39 = sshll.u32 [#allocation7], 4
      %s40 = int_to_ptr.vmem [resolvable:$true] %s39
      %45 = dma.hbm_to_vmem [thread:$0]  %s2, 512, %s40, [#allocation6], 128, 128, 8
    $region13: #{tpu_custom_call.1} parent=1 // pred_fallthru
      _
    // Predicated region
    $region14: #{tpu_custom_call.1} parent=1 // pred_check
      _
    $region15: #{tpu_custom_call.1} parent=1 // pred_check_branch
      %47 = sbr.rel (0) target = $region17
    $region16: #{tpu_custom_call.1} parent=1 // pred_region
      _
    $region17: #{tpu_custom_call.1} parent=1 // pred_fallthru
      _
    // Predicated region
    $region18: #{tpu_custom_call.1} parent=1 // pred_check
      _
    $region19: #{tpu_custom_call.1} parent=1 // pred_check_branch
      %49 = sbr.rel (0) target = $region21
    $region20: #{tpu_custom_call.1} parent=1 // pred_region
      %50 = dma.done [#allocation3], 128
    $region21: #{tpu_custom_call.1} parent=1 // pred_fallthru
      _
    // Predicated region
    $region22: #{tpu_custom_call.1} parent=1 // pred_check
      _
    $region23: #{tpu_custom_call.1} parent=1 // pred_check_branch
      %52 = sbr.rel (0) target = $region25
    $region24: #{tpu_custom_call.1} parent=1 // pred_region
      %53 = dma.done [#allocation6], 512
    $region25: #{tpu_custom_call.1} parent=1 // pred_fallthru
      _
    // Predicated region
    $region26: #{tpu_custom_call.1} parent=1 // pred_check
      _
    $region27: #{tpu_custom_call.1} parent=1 // pred_check_branch
      %55 = sbr.rel (0) target = $region29
    $region28: #{tpu_custom_call.1} parent=1 // pred_region
      %56 = dma.done [#allocation6], 512
    $region29: #{tpu_custom_call.1} parent=1 // pred_fallthru
      _
    %v57 = vld [vmem:[#allocation2] sm:$0xff]
    %v58 = vld [vmem:[#allocation5] sm:$0xff]
    %vm59 = vcmp.lt.s32.totalorder %v58, 858993459
    %v60 = vsel %vm59, 1, 0
    %s61 = scalar_lea.vmem [#allocation5], 8
    %v62 = vld [vmem:[%s61] sm:$0xff]
    %vm63 = vcmp.lt.s32.totalorder %v62, 858993459
    %v64 = vsel %vm63, 1, 0
    %v65 = vadd.s32 %v60, %v64
    %s66 = scalar_lea.vmem [#allocation5], 16
    %v67 = vld [vmem:[%s66] sm:$0xff]
    %vm68 = vcmp.lt.s32.totalorder %v67, 858993459
    %v69 = vsel %vm68, 1, 0
    %v70 = vadd.s32 %v65, %v69
    %s71 = scalar_lea.vmem [#allocation5], 24
    %v72 = vld [vmem:[%s71] sm:$0xff]
    %vm73 = vcmp.lt.s32.totalorder %v72, 858993459
    %v74 = vsel %vm73, 1, 0
    %v75 = vadd.s32 %v70, %v74
    %v76 = vcvt.s32.f32 %v75
    %v77 = vmul.f32 %v76, 0.35714287
    %v78 = vmul.f32 %v57, %v77
    %v79 = vld [vmem:[#allocation7] sm:$0xff]
    %v80 = vld [vmem:[#allocation7 + $0x8] sm:$0xff]
    %v81 = vld [vmem:[#allocation7 + $0x10] sm:$0xff]
    %v82 = vld [vmem:[#allocation7 + $0x18] sm:$0xff]
    %v83 = vld [vmem:[%s3] sm:$0x1]
    %v85 = vlaneseq
    %v86 = vshrl.u32 %v85, 7
    %v87 = vsub.s32 0, %v86
    %v88 = vrot.slane %v83, %v87
    %vm90 = vcmask 261120
    %v92 = vsel %vm90, %v78, 0
    %94 = vmatprep.subr.mxu0 0.0
    %95 = vmatpush1.msra.mxu0 0.0
    %96 = vmatprep.subr.mxu0 0.0
    %97 = vmatpush1.msra.mxu0 0.0
    %98 = vmatprep.subr.mxu0 0.0
    %99 = vmatpush1.msra.mxu0 0.0
    %100 = vmatprep.subr.mxu0 0.0
    %101 = vmatpush1.msra.mxu0 0.0
    %102 = vmatprep.subr.mxu0 0.0
    %103 = vmatpush1.msra.mxu0 0.0
    %104 = vmatprep.subr.mxu0 0.0
    %105 = vmatpush1.msra.mxu0 0.0
    %106 = vmatprep.subr.mxu0 0.0
    %107 = vmatpush1.msra.mxu0 0.0
    %108 = vmatprep.subr.mxu0 0.0
    %109 = vmatpush1.msra.mxu0 0.0
    %110 = vmatprep.subr.mxu0 0.0
    %111 = vmatpush1.msra.mxu0 0.0
    %112 = vmatprep.subr.mxu0 0.0
    %113 = vmatpush1.msra.mxu0 0.0
    %114 = vmatprep.subr.mxu0 0.0
    %115 = vmatpush1.msra.mxu0 0.0
    %116 = vmatprep.subr.mxu0 0.0
    %117 = vmatpush1.msra.mxu0 0.0
    %118 = vmatprep.subr.mxu0 0.0
    %119 = vmatpush1.msra.mxu0 %v82
    %120 = vmatprep.subr.mxu0 0.0
    %121 = vmatpush1.msra.mxu0 %v81
    %122 = vmatprep.subr.mxu0 0.0
    %123 = vmatpush1.msra.mxu0 %v80
    %124 = vmatprep.subr.mxu0 0.0
    %125 = vmatpush1.msra.mxu0 %v79
    %126 = vmatprep.subr.mxu0 0.0
    %127 = vmatpush2.msra.mxu0 0.0
    %128 = vmatprep.subr.mxu0 0.0
    %129 = vmatpush2.msra.mxu0 0.0
    %130 = vmatprep.subr.mxu0 0.0
    %131 = vmatpush2.msra.mxu0 0.0
    %132 = vmatprep.subr.mxu0 0.0
    %133 = vmatpush2.msra.mxu0 0.0
    %134 = vmatprep.subr.mxu0 0.0
    %135 = vmatpush2.msra.mxu0 0.0
    %136 = vmatprep.subr.mxu0 0.0
    %137 = vmatpush2.msra.mxu0 0.0
    %138 = vmatprep.subr.mxu0 0.0
    %139 = vmatpush2.msra.mxu0 0.0
    %140 = vmatprep.subr.mxu0 0.0
    %141 = vmatpush2.msra.mxu0 0.0
    %142 = vmatprep.subr.mxu0 0.0
    %143 = vmatpush2.msra.mxu0 0.0
    %144 = vmatprep.subr.mxu0 0.0
    %145 = vmatpush2.msra.mxu0 0.0
    %146 = vmatprep.subr.mxu0 0.0
    %147 = vmatpush2.msra.mxu0 0.0
    %148 = vmatprep.subr.mxu0 0.0
    %149 = vmatpush2.msra.mxu0 0.0
    %150 = vmatprep.subr.mxu0 0.0
    %151 = vmatpush2.msra.mxu0 0.0
    %152 = vmatprep.subr.mxu0 0.0
    %153 = vmatpush2.msra.mxu0 0.0
    %154 = vmatprep.subr.mxu0 0.0
    %155 = vmatpush2.msra.mxu0 0.0
    %156 = vmatprep.subr.mxu0 0.0
    %157 = vmatpush2.msra.mxu0 0.0
    %158 = vmatprep.mubr.f32.mxu0 0.0
    %159 = vmatmul.mubr.f32.gmra.mxu0 %v92
    %v160 = vpop.f32.mrf.mxu0
    %v161 = vadd.f32 %v88, %v160
    %v162 = vpop.f32.mrf.mxu0
    %163 = vdwg.mxu0
    %164 = vst [vmem:[#allocation8] sm:$0xff] %v161
    // Predicated region
    $region30: #{tpu_custom_call.1} parent=1 // pred_check
      _
    $region31: #{tpu_custom_call.1} parent=1 // pred_check_branch
      %166 = sbr.rel (0) target = $region33
    $region32: #{tpu_custom_call.1} parent=1 // pred_region
      %s168 = ssub.s32 128, 128
      %169 = vsyncadd [#allocation4], %s168
      %s171 = sshll.u32 [#allocation8], 4
      %s172 = int_to_ptr.vmem [resolvable:$true] %s171
      %174 = dma.vmem_to_hbm [thread:$0]  %s172, 128, %s4, [#allocation4]
    $region33: #{tpu_custom_call.1} parent=1 // pred_fallthru
      _
    // Predicated region
    $region34: #{tpu_custom_call.1} parent=1 // pred_check
      _
    $region35: #{tpu_custom_call.1} parent=1 // pred_check_branch
      %176 = sbr.rel (0) target = $region37
    $region36: #{tpu_custom_call.1} parent=1 // pred_region
      %177 = dma.done [#allocation4], 128
    $region37: #{tpu_custom_call.1} parent=1 // pred_fallthru
      _
    %178 = vsyncpa [#allocation3], 1
    %179 = vsyncpa [#allocation6], 1
    %180 = vsyncpa [#allocation4], 1

</llo_original>
